<compile_context>
chip_gen: v6e
topology: v6e:2x2x1
jax: 0.10.0
libtpu: 0.0.40
codegen_flags: <defaults>
</compile_context>

<pallas_src>
import functools

import jax
import jax.numpy as jnp
from jax.experimental import pallas as pl
from jax.experimental.pallas import tpu as pltpu


def _linear_rows_kernel(x_ref, wt_ref, b_ref, o_ref):
    """y = x @ W.T + b for tiny K (K in {1, 4}), natural [rows, H] layout.

    x_ref:  (tile, K)  rows on the sublane axis, K input features on lanes
    wt_ref: (K, H)     pre-transposed weight (W.T), resident across the grid
    b_ref:  (1, H)     bias row
    o_ref:  (tile, H)  output rows, natural [rows, H] layout
    """
    x = x_ref[...].astype(jnp.float32)
    w = wt_ref[...].astype(jnp.float32)
    # Unrolled VPU broadcast-FMAs: K is at most 4, so the MXU (and its
    # push/pop latency) is skipped entirely; exact f32 accumulation.
    acc = b_ref[...].astype(jnp.float32) + x[:, 0:1] * w[0:1, :]
    for k in range(1, w.shape[0]):
        acc = acc + x[:, k:k + 1] * w[k:k + 1, :]
    o_ref[...] = acc.astype(o_ref.dtype)


def _round_up(x, m):
    return ((x + m - 1) // m) * m


def _pick_row_tile(n_rows, h, out_itemsize):
    """Row tile: big enough for HBM roofline, small enough for VMEM, and
    capped so the 'parallel' row axis gets >= 2 steps on large inputs (v7x)."""
    if n_rows <= 0:
        return 1
    # Keep the double-buffered output block (2 * tile * H * itemsize) around
    # ~6-8 MiB: safe under v5e's 16 MiB default scoped limit and far under
    # v7x's 64 MiB physical VMEM, while staying >= 512 rows (~85% of HBM
    # roofline is reached by tile 512-1024).
    budget_bytes = 6 * 1024 * 1024
    t = budget_bytes // max(1, 2 * h * out_itemsize)
    t = int(max(512, min(2048, t)))
    t -= t % 8
    if n_rows >= 1024:
        # Guarantee at least two grid steps so both v7x TensorCores get work.
        half = _round_up(pl.cdiv(n_rows, 2), 8)
        t = max(512, min(t, half))
    # Never exceed the row count: tile == n_rows (equal to the full array
    # dim) is always a legal block shape, and avoids an oversized block.
    return max(1, min(t, n_rows))


def _linear_rows(x, w_t, b_row, out_dtype):
    """One Linear layer over rows of `x`, tiled independently of any other."""
    n_rows, k_in = x.shape
    h = w_t.shape[1]
    tile = _pick_row_tile(n_rows, h, jnp.dtype(out_dtype).itemsize)
    grid = (pl.cdiv(n_rows, tile),)

    return pl.pallas_call(
        _linear_rows_kernel,
        out_shape=jax.ShapeDtypeStruct((n_rows, h), out_dtype),
        grid_spec=pltpu.PrefetchScalarGridSpec(
            num_scalar_prefetch=0,
            grid=grid,
            in_specs=[
                pl.BlockSpec((tile, k_in), lambda i: (i, 0)),   # row tile
                pl.BlockSpec((k_in, h), lambda i: (0, 0)),      # W.T (resident)
                pl.BlockSpec((1, h), lambda i: (0, 0)),         # bias row
            ],
            out_specs=pl.BlockSpec((tile, h), lambda i: (i, 0)),
        ),
        compiler_params=pltpu.CompilerParams(
            dimension_semantics=("parallel",),        # rows are independent
            vmem_limit_bytes=32 * 1024 * 1024,
        ),
    )(x, w_t, b_row)


@jax.jit
def encoder_forward(read_data_batched, overlap_similarity,
                    node_wt, node_b_row, edge_wt, edge_b_row):
    """node_hidden = x_node @ W_node.T + b_node ; edge_hidden likewise.

    Two independent pallas_calls so node/edge row counts do not inflate each
    other; outputs come back already in the PyTorch [rows, H] layout (no
    wrapper transposes, no padding passes).
    """
    dtype = read_data_batched.dtype
    node_hidden = _linear_rows(read_data_batched, node_wt, node_b_row, dtype)
    edge_hidden = _linear_rows(overlap_similarity, edge_wt, edge_b_row, dtype)
    return node_hidden, edge_hidden


class EncoderPallas:
    """JAX/Pallas equivalent of the PyTorch Encoder module."""

    def __init__(self, hidden_dim, key):
        k1, k2, k3, k4 = jax.random.split(key, 4)
        # nn.Linear-style init, PyTorch [out, in] weight layout.
        bound_node = 1.0 / jnp.sqrt(4.0)
        bound_edge = 1.0
        self.node_w = jax.random.uniform(
            k1, (hidden_dim, 4), jnp.float32, -bound_node, bound_node)
        self.node_b = jax.random.uniform(
            k2, (hidden_dim,), jnp.float32, -bound_node, bound_node)
        self.edge_w = jax.random.uniform(
            k3, (hidden_dim, 1), jnp.float32, -bound_edge, bound_edge)
        self.edge_b = jax.random.uniform(
            k4, (hidden_dim,), jnp.float32, -bound_edge, bound_edge)
        # Kernel-ready layouts prepared once (no per-call reshape/transpose).
        self.node_wt = jnp.asarray(self.node_w.T)        # (4, H)
        self.edge_wt = jnp.asarray(self.edge_w.T)        # (1, H)
        self.node_b_row = self.node_b[None, :]           # (1, H)
        self.edge_b_row = self.edge_b[None, :]           # (1, H)

    def __call__(self, overlap_similarity, read_data_batched):
        return encoder_forward(
            read_data_batched, overlap_similarity,
            self.node_wt, self.node_b_row, self.edge_wt, self.edge_b_row)


if __name__ == "__main__":
    hidden_dim = 32
    n_nodes, n_edges = 16, 32

    key = jax.random.PRNGKey(0)
    k_params, k_nodes, k_edges = jax.random.split(key, 3)

    encoder = EncoderPallas(hidden_dim, k_params)

    read_data_batched = jax.random.normal(k_nodes, (n_nodes, 4), jnp.float32)
    overlap_similarity = jax.random.normal(k_edges, (n_edges, 1), jnp.float32)

    node_hidden, edge_hidden = encoder(overlap_similarity, read_data_batched)
    jax.block_until_ready((node_hidden, edge_hidden))

    # Correctness check against plain JAX reference (PyTorch semantics).
    node_ref = read_data_batched @ encoder.node_w.T + encoder.node_b
    edge_ref = overlap_similarity @ encoder.edge_w.T + encoder.edge_b
    assert node_hidden.shape == (n_nodes, hidden_dim)
    assert edge_hidden.shape == (n_edges, hidden_dim)
    assert jnp.allclose(node_hidden, node_ref, atol=1e-5)
    assert jnp.allclose(edge_hidden, edge_ref, atol=1e-5)

    print("KERNEL_OK")
</pallas_src>

<mosaic_0001>
module attributes {stable_mosaic.version = 11 : i64} {
  func.func @_linear_rows_kernel(%arg0: i32, %arg1: memref<32x1xf32, #tpu.memory_space<vmem>>, %arg2: memref<1x32xf32, #tpu.memory_space<vmem>>, %arg3: memref<1x32xf32, #tpu.memory_space<vmem>>, %arg4: memref<32x32xf32, #tpu.memory_space<vmem>>) attributes {dimension_semantics = [#tpu.dimension_semantics<parallel>], iteration_bounds = array<i64: 1>, scalar_prefetch = 0 : i64, scratch_operands = 0 : i64, tpu.core_type = #tpu.core_type<tc>, window_params = [{transform_indices = @transform_0, window_bounds = array<i64: 32, 1>}, {pipeline_mode = #tpu.pipeline_mode<synchronous>, transform_indices = @transform_1, window_bounds = array<i64: 1, 32>}, {pipeline_mode = #tpu.pipeline_mode<synchronous>, transform_indices = @transform_2, window_bounds = array<i64: 1, 32>}, {transform_indices = @transform_3, window_bounds = array<i64: 32, 32>}]} {
    %c0 = arith.constant 0 : index
    %c0_0 = arith.constant 0 : index
    %0 = vector.load %arg1[%c0, %c0_0] : memref<32x1xf32, #tpu.memory_space<vmem>>, vector<32x1xf32>
    %c0_1 = arith.constant 0 : index
    %c0_2 = arith.constant 0 : index
    %1 = vector.load %arg2[%c0_1, %c0_2] : memref<1x32xf32, #tpu.memory_space<vmem>>, vector<1x32xf32>
    %c0_3 = arith.constant 0 : index
    %c0_4 = arith.constant 0 : index
    %2 = vector.load %arg3[%c0_3, %c0_4] : memref<1x32xf32, #tpu.memory_space<vmem>>, vector<1x32xf32>
    %3 = vector.broadcast %0 : vector<32x1xf32> to vector<32x32xf32>
    %4 = vector.broadcast %1 : vector<1x32xf32> to vector<32x32xf32>
    %5 = arith.mulf %3, %4 : vector<32x32xf32>
    %6 = vector.broadcast %2 : vector<1x32xf32> to vector<32x32xf32>
    %7 = arith.addf %6, %5 : vector<32x32xf32>
    %c0_5 = arith.constant 0 : index
    %c0_6 = arith.constant 0 : index
    %8 = vector.load %arg4[%c0_5, %c0_6] : memref<32x32xf32, #tpu.memory_space<vmem>>, vector<32x32xf32>
    tpu.vector_store %arg4[%c0_5, %c0_6], %7 {strides = array<i32>} : memref<32x32xf32, #tpu.memory_space<vmem>>, vector<32x32xf32>,
    return
  }
  func.func @transform_0(%arg0: i32) -> (i32, i32) {
    %c0_i32 = arith.constant 0 : i32
    %c0_i32_0 = arith.constant 0 : i32
    return %arg0, %c0_i32 : i32, i32
  }
  func.func @transform_1(%arg0: i32) -> (i32, i32) {
    %c0_i32 = arith.constant 0 : i32
    %c0_i32_0 = arith.constant 0 : i32
    %c0_i32_1 = arith.constant 0 : i32
    return %c0_i32, %c0_i32_0 : i32, i32
  }
  func.func @transform_2(%arg0: i32) -> (i32, i32) {
    %c0_i32 = arith.constant 0 : i32
    %c0_i32_0 = arith.constant 0 : i32
    %c0_i32_1 = arith.constant 0 : i32
    return %c0_i32, %c0_i32_0 : i32, i32
  }
  func.func @transform_3(%arg0: i32) -> (i32, i32) {
    %c0_i32 = arith.constant 0 : i32
    %c0_i32_0 = arith.constant 0 : i32
    return %arg0, %c0_i32 : i32, i32
  }
}

module attributes {stable_mosaic.version = 11 : i64} {
  func.func @_linear_rows_kernel(%arg0: i32, %arg1: memref<16x4xf32, #tpu.memory_space<vmem>>, %arg2: memref<4x32xf32, #tpu.memory_space<vmem>>, %arg3: memref<1x32xf32, #tpu.memory_space<vmem>>, %arg4: memref<16x32xf32, #tpu.memory_space<vmem>>) attributes {dimension_semantics = [#tpu.dimension_semantics<parallel>], iteration_bounds = array<i64: 1>, scalar_prefetch = 0 : i64, scratch_operands = 0 : i64, tpu.core_type = #tpu.core_type<tc>, window_params = [{transform_indices = @transform_0, window_bounds = array<i64: 16, 4>}, {pipeline_mode = #tpu.pipeline_mode<synchronous>, transform_indices = @transform_1, window_bounds = array<i64: 4, 32>}, {pipeline_mode = #tpu.pipeline_mode<synchronous>, transform_indices = @transform_2, window_bounds = array<i64: 1, 32>}, {transform_indices = @transform_3, window_bounds = array<i64: 16, 32>}]} {
    %c0 = arith.constant 0 : index
    %c0_0 = arith.constant 0 : index
    %0 = vector.load %arg1[%c0, %c0_0] : memref<16x4xf32, #tpu.memory_space<vmem>>, vector<16x4xf32>
    %c0_1 = arith.constant 0 : index
    %c0_2 = arith.constant 0 : index
    %1 = vector.load %arg2[%c0_1, %c0_2] : memref<4x32xf32, #tpu.memory_space<vmem>>, vector<4x32xf32>
    %c0_3 = arith.constant 0 : index
    %c0_4 = arith.constant 0 : index
    %2 = vector.load %arg3[%c0_3, %c0_4] : memref<1x32xf32, #tpu.memory_space<vmem>>, vector<1x32xf32>
    %3 = vector.extract_strided_slice %0 {offsets = [0, 0], sizes = [16, 1], strides = [1, 1]} : vector<16x4xf32> to vector<16x1xf32>
    %4 = vector.extract_strided_slice %1 {offsets = [0, 0], sizes = [1, 32], strides = [1, 1]} : vector<4x32xf32> to vector<1x32xf32>
    %5 = vector.broadcast %3 : vector<16x1xf32> to vector<16x32xf32>
    %6 = vector.broadcast %4 : vector<1x32xf32> to vector<16x32xf32>
    %7 = arith.mulf %5, %6 : vector<16x32xf32>
    %8 = vector.broadcast %2 : vector<1x32xf32> to vector<16x32xf32>
    %9 = arith.addf %8, %7 : vector<16x32xf32>
    %10 = vector.extract_strided_slice %0 {offsets = [0, 1], sizes = [16, 1], strides = [1, 1]} : vector<16x4xf32> to vector<16x1xf32>
    %11 = vector.extract_strided_slice %1 {offsets = [1, 0], sizes = [1, 32], strides = [1, 1]} : vector<4x32xf32> to vector<1x32xf32>
    %12 = vector.broadcast %10 : vector<16x1xf32> to vector<16x32xf32>
    %13 = vector.broadcast %11 : vector<1x32xf32> to vector<16x32xf32>
    %14 = arith.mulf %12, %13 : vector<16x32xf32>
    %15 = arith.addf %9, %14 : vector<16x32xf32>
    %16 = vector.extract_strided_slice %0 {offsets = [0, 2], sizes = [16, 1], strides = [1, 1]} : vector<16x4xf32> to vector<16x1xf32>
    %17 = vector.extract_strided_slice %1 {offsets = [2, 0], sizes = [1, 32], strides = [1, 1]} : vector<4x32xf32> to vector<1x32xf32>
    %18 = vector.broadcast %16 : vector<16x1xf32> to vector<16x32xf32>
    %19 = vector.broadcast %17 : vector<1x32xf32> to vector<16x32xf32>
    %20 = arith.mulf %18, %19 : vector<16x32xf32>
    %21 = arith.addf %15, %20 : vector<16x32xf32>
    %22 = vector.extract_strided_slice %0 {offsets = [0, 3], sizes = [16, 1], strides = [1, 1]} : vector<16x4xf32> to vector<16x1xf32>
    %23 = vector.extract_strided_slice %1 {offsets = [3, 0], sizes = [1, 32], strides = [1, 1]} : vector<4x32xf32> to vector<1x32xf32>
    %24 = vector.broadcast %22 : vector<16x1xf32> to vector<16x32xf32>
    %25 = vector.broadcast %23 : vector<1x32xf32> to vector<16x32xf32>
    %26 = arith.mulf %24, %25 : vector<16x32xf32>
    %27 = arith.addf %21, %26 : vector<16x32xf32>
    %c0_5 = arith.constant 0 : index
    %c0_6 = arith.constant 0 : index
    %28 = vector.load %arg4[%c0_5, %c0_6] : memref<16x32xf32, #tpu.memory_space<vmem>>, vector<16x32xf32>
    tpu.vector_store %arg4[%c0_5, %c0_6], %27 {strides = array<i32>} : memref<16x32xf32, #tpu.memory_space<vmem>>, vector<16x32xf32>,
    return
  }
  func.func @transform_0(%arg0: i32) -> (i32, i32) {
    %c0_i32 = arith.constant 0 : i32
    %c0_i32_0 = arith.constant 0 : i32
    return %arg0, %c0_i32 : i32, i32
  }
  func.func @transform_1(%arg0: i32) -> (i32, i32) {
    %c0_i32 = arith.constant 0 : i32
    %c0_i32_0 = arith.constant 0 : i32
    %c0_i32_1 = arith.constant 0 : i32
    return %c0_i32, %c0_i32_0 : i32, i32
  }
  func.func @transform_2(%arg0: i32) -> (i32, i32) {
    %c0_i32 = arith.constant 0 : i32
    %c0_i32_0 = arith.constant 0 : i32
    %c0_i32_1 = arith.constant 0 : i32
    return %c0_i32, %c0_i32_0 : i32, i32
  }
  func.func @transform_3(%arg0: i32) -> (i32, i32) {
    %c0_i32 = arith.constant 0 : i32
    %c0_i32_0 = arith.constant 0 : i32
    return %arg0, %c0_i32 : i32, i32
  }
}

</mosaic_0001>

<llo_original>
// kernel: encoder_forward.2
$region0: #{encoder_forward.2}
  #allocation0 [shape = 'u32[]', space=smem, size = 0x4, offset = 0x4, fixed_abs, tag = 'smem constant byte address 0x4 - core index']
  #allocation1 [shape = 'u32[144,128]{1,0:T(1,128)}', space=vmem, size = 0x12000, scoped, tag = 'internal scratch']
  %s0 = inlined_call_operand.vmem [shape: f32[16,4], index: 0, kind: input, shape index: {}]
  %s1 = inlined_call_operand.vmem [shape: f32[4,32], index: 1, kind: input, shape index: {}]
  %s2 = inlined_call_operand.vmem [shape: f32[1,32], index: 2, kind: input, shape index: {}]
  %s3 = inlined_call_operand.hbm [shape: f32[16,32], index: 3, kind: output, shape index: {}]
  %s4 = sld [smem:[#allocation0]]
  $region22: #{encoder_forward.2} parent=0
    _
  %s6 = ssub.s32 1, %s4
  %s7 = scalar_select 0, %s6, %s4
  $region1: #{encoder_forward.2} parent=0
    #allocation2 [shape = 'u8[8192]{0}', space=vmem, size = 0x2000, scoped, tag = 'output window, operand 0, single buffered']
    #allocation3 [shape = 's32[1]{0}', space=sflag, size = 0x4, scoped, tag = 'scoped memory for encoder_forward.2']
    %8 = vsyncpa [#allocation3], 0
    // Predicated region
    $region2: #{encoder_forward.2} parent=1 // pred_check
      _
    $region3: #{encoder_forward.2} parent=1 // pred_check_branch
      %10 = sbr.rel (0) target = $region5
    $region4: #{encoder_forward.2} parent=1 // pred_region
      _
    $region5: #{encoder_forward.2} parent=1 // pred_fallthru
      _
    // Predicated region
    $region6: #{encoder_forward.2} parent=1 // pred_check
      _
    $region7: #{encoder_forward.2} parent=1 // pred_check_branch
      %12 = sbr.rel (0) target = $region9
    $region8: #{encoder_forward.2} parent=1 // pred_region
      _
    $region9: #{encoder_forward.2} parent=1 // pred_fallthru
      _
    // Predicated region
    $region10: #{encoder_forward.2} parent=1 // pred_check
      _
    $region11: #{encoder_forward.2} parent=1 // pred_check_branch
      %14 = sbr.rel (0) target = $region13
    $region12: #{encoder_forward.2} parent=1 // pred_region
      _
    $region13: #{encoder_forward.2} parent=1 // pred_fallthru
      _
    %v15 = vld [vmem:[%s0] sm:$0xff]
    %v16 = vld [vmem:[%s0 + $0x8] sm:$0xff]
    %v17 = vld [vmem:[%s1] sm:$0xf]
    %v18 = vld [vmem:[%s2] sm:$0x1]
    %20 = vset.pattern.permute.xlu0 0
    %21 = vperm.xlu0 %20, %v15
    %v22 = vpop.permute.xlu0 %21
    %25 = vset.pattern.permute.xlu0 0
    %26 = vperm.xlu0 %25, %v16
    %v27 = vpop.permute.xlu0 %26
    %v29 = vlaneseq
    %v30 = vshrl.u32 %v29, 7
    %v31 = vsub.s32 0, %v30
    %v32 = vrot.slane %v17, %v31
    %v33 = vmul.f32 %v22, %v32
    %v34 = vmul.f32 %v27, %v32
    %v36 = vlaneseq
    %v37 = vshrl.u32 %v36, 7
    %v38 = vsub.s32 0, %v37
    %v39 = vrot.slane %v18, %v38
    %v41 = vadd.f32 %v39, %v33
    %v42 = vadd.f32 %v39, %v34
    %43 = vset.pattern.permute.xlu0 1
    %44 = vperm.xlu0 %43, %v15
    %v45 = vpop.permute.xlu0 %44
    %47 = vset.pattern.permute.xlu0 1
    %48 = vperm.xlu0 %47, %v16
    %v49 = vpop.permute.xlu0 %48
    %v51 = vlaneseq
    %v52 = vshrl.u32 %v51, 7
    %v53 = vsub.s32 1, %v52
    %v54 = vrot.slane %v17, %v53
    %v55 = vmul.f32 %v45, %v54
    %v56 = vmul.f32 %v49, %v54
    %v57 = vadd.f32 %v41, %v55
    %v58 = vadd.f32 %v42, %v56
    %59 = vset.pattern.permute.xlu0 2
    %60 = vperm.xlu0 %59, %v15
    %v61 = vpop.permute.xlu0 %60
    %63 = vset.pattern.permute.xlu0 2
    %64 = vperm.xlu0 %63, %v16
    %v65 = vpop.permute.xlu0 %64
    %v67 = vlaneseq
    %v68 = vshrl.u32 %v67, 7
    %v69 = vsub.s32 2, %v68
    %v70 = vrot.slane %v17, %v69
    %v71 = vmul.f32 %v61, %v70
    %v72 = vmul.f32 %v65, %v70
    %v73 = vadd.f32 %v57, %v71
    %v74 = vadd.f32 %v58, %v72
    %75 = vset.pattern.permute.xlu0 3
    %76 = vperm.xlu0 %75, %v15
    %v77 = vpop.permute.xlu0 %76
    %79 = vset.pattern.permute.xlu0 3
    %80 = vperm.xlu0 %79, %v16
    %v81 = vpop.permute.xlu0 %80
    %v83 = vlaneseq
    %v84 = vshrl.u32 %v83, 7
    %v85 = vsub.s32 3, %v84
    %v86 = vrot.slane %v17, %v85
    %v87 = vmul.f32 %v77, %v86
    %v88 = vmul.f32 %v81, %v86
    %v89 = vadd.f32 %v73, %v87
    %v90 = vadd.f32 %v74, %v88
    %vm91 = vcmask 261120
    %92 = vst.msk [vmem:[#allocation2] sm:$0xff] %vm91, %v89
    %93 = vst.msk [vmem:[#allocation2 + $0x8] sm:$0xff] %vm91, %v90
    // Predicated region
    $region14: #{encoder_forward.2} parent=1 // pred_check
      _
    $region15: #{encoder_forward.2} parent=1 // pred_check_branch
      %95 = sbr.rel (0) target = $region17
    $region16: #{encoder_forward.2} parent=1 // pred_region
      %s97 = ssub.s32 256, 256
      %98 = vsyncadd [#allocation3], %s97
      %s99 = sshll.u32 [#allocation2], 4
      %s100 = int_to_ptr.vmem [resolvable:$true] %s99
      %105 = dma.vmem_to_hbm [thread:$0]  %s100, 256, %s3, [#allocation3], 128, 128, 8
    $region17: #{encoder_forward.2} parent=1 // pred_fallthru
      _
    // Predicated region
    $region18: #{encoder_forward.2} parent=1 // pred_check
      _
    $region19: #{encoder_forward.2} parent=1 // pred_check_branch
      %107 = sbr.rel (0) target = $region21
    $region20: #{encoder_forward.2} parent=1 // pred_region
      %108 = dma.done [#allocation3], 256
    $region21: #{encoder_forward.2} parent=1 // pred_fallthru
      _
    %109 = vsyncpa [#allocation3], 1

// kernel: encoder_forward.3
$region0: #{encoder_forward.3}
  #allocation0 [shape = 'u32[]', space=smem, size = 0x4, offset = 0x4, fixed_abs, tag = 'smem constant byte address 0x4 - core index']
  #allocation1 [shape = 'u32[144,128]{1,0:T(1,128)}', space=vmem, size = 0x12000, scoped, tag = 'internal scratch']
  %s0 = inlined_call_operand.vmem [shape: f32[32,1], index: 0, kind: input, shape index: {}]
  %s1 = inlined_call_operand.vmem [shape: f32[1,32], index: 1, kind: input, shape index: {}]
  %s2 = inlined_call_operand.vmem [shape: f32[1,32], index: 2, kind: input, shape index: {}]
  %s3 = inlined_call_operand.hbm [shape: f32[32,32], index: 3, kind: output, shape index: {}]
  %s4 = sld [smem:[#allocation0]]
  $region22: #{encoder_forward.3} parent=0
    _
  %s6 = ssub.s32 1, %s4
  %s7 = scalar_select 0, %s6, %s4
  $region1: #{encoder_forward.3} parent=0
    #allocation2 [shape = 'u8[16384]{0}', space=vmem, size = 0x4000, scoped, tag = 'output window, operand 0, single buffered']
    #allocation3 [shape = 's32[1]{0}', space=sflag, size = 0x4, scoped, tag = 'scoped memory for encoder_forward.3']
    %8 = vsyncpa [#allocation3], 0
    // Predicated region
    $region2: #{encoder_forward.3} parent=1 // pred_check
      _
    $region3: #{encoder_forward.3} parent=1 // pred_check_branch
      %10 = sbr.rel (0) target = $region5
    $region4: #{encoder_forward.3} parent=1 // pred_region
      _
    $region5: #{encoder_forward.3} parent=1 // pred_fallthru
      _
    // Predicated region
    $region6: #{encoder_forward.3} parent=1 // pred_check
      _
    $region7: #{encoder_forward.3} parent=1 // pred_check_branch
      %12 = sbr.rel (0) target = $region9
    $region8: #{encoder_forward.3} parent=1 // pred_region
      _
    $region9: #{encoder_forward.3} parent=1 // pred_fallthru
      _
    // Predicated region
    $region10: #{encoder_forward.3} parent=1 // pred_check
      _
    $region11: #{encoder_forward.3} parent=1 // pred_check_branch
      %14 = sbr.rel (0) target = $region13
    $region12: #{encoder_forward.3} parent=1 // pred_region
      _
    $region13: #{encoder_forward.3} parent=1 // pred_fallthru
      _
    %v15 = vld [vmem:[%s0] sm:$0xff]
    %v16 = vld [vmem:[%s0 + $0x8] sm:$0xff]
    %v17 = vld [vmem:[%s0 + $0x10] sm:$0xff]
    %v18 = vld [vmem:[%s0 + $0x18] sm:$0xff]
    %v19 = vld [vmem:[%s1] sm:$0x1]
    %v20 = vld [vmem:[%s2] sm:$0x1]
    %22 = vset.pattern.permute.xlu0 0
    %23 = vperm.xlu0 %22, %v15
    %v24 = vpop.permute.xlu0 %23
    %27 = vset.pattern.permute.xlu0 0
    %28 = vperm.xlu0 %27, %v16
    %v29 = vpop.permute.xlu0 %28
    %32 = vset.pattern.permute.xlu0 0
    %33 = vperm.xlu0 %32, %v17
    %v34 = vpop.permute.xlu0 %33
    %37 = vset.pattern.permute.xlu0 0
    %38 = vperm.xlu0 %37, %v18
    %v39 = vpop.permute.xlu0 %38
    %v42 = vlaneseq
    %v43 = vshrl.u32 %v42, 7
    %v44 = vsub.s32 0, %v43
    %v45 = vrot.slane %v19, %v44
    %v47 = vmul.f32 %v24, %v45
    %v48 = vmul.f32 %v29, %v45
    %v49 = vmul.f32 %v34, %v45
    %v50 = vmul.f32 %v39, %v45
    %v52 = vlaneseq
    %v53 = vshrl.u32 %v52, 7
    %v54 = vsub.s32 0, %v53
    %v55 = vrot.slane %v20, %v54
    %v57 = vadd.f32 %v55, %v47
    %v58 = vadd.f32 %v55, %v48
    %v59 = vadd.f32 %v55, %v49
    %v60 = vadd.f32 %v55, %v50
    %vm61 = vcmask 261120
    %62 = vst.msk [vmem:[#allocation2] sm:$0xff] %vm61, %v57
    %63 = vst.msk [vmem:[#allocation2 + $0x8] sm:$0xff] %vm61, %v58
    %64 = vst.msk [vmem:[#allocation2 + $0x10] sm:$0xff] %vm61, %v59
    %65 = vst.msk [vmem:[#allocation2 + $0x18] sm:$0xff] %vm61, %v60
    // Predicated region
    $region14: #{encoder_forward.3} parent=1 // pred_check
      _
    $region15: #{encoder_forward.3} parent=1 // pred_check_branch
      %67 = sbr.rel (0) target = $region17
    $region16: #{encoder_forward.3} parent=1 // pred_region
      %s69 = ssub.s32 512, 512
      %70 = vsyncadd [#allocation3], %s69
      %s71 = sshll.u32 [#allocation2], 4
      %s72 = int_to_ptr.vmem [resolvable:$true] %s71
      %77 = dma.vmem_to_hbm [thread:$0]  %s72, 512, %s3, [#allocation3], 128, 128, 8
    $region17: #{encoder_forward.3} parent=1 // pred_fallthru
      _
    // Predicated region
    $region18: #{encoder_forward.3} parent=1 // pred_check
      _
    $region19: #{encoder_forward.3} parent=1 // pred_check_branch
      %79 = sbr.rel (0) target = $region21
    $region20: #{encoder_forward.3} parent=1 // pred_region
      %80 = dma.done [#allocation3], 512
    $region21: #{encoder_forward.3} parent=1 // pred_fallthru
      _
    %81 = vsyncpa [#allocation3], 1

</llo_original>
